<compile_context>
chip_gen: v7x
topology: tpu7x:2x2x1
jax: 0.10.0
libtpu: 0.0.40
codegen_flags: <defaults>
</compile_context>

<pallas_src>
import functools

import jax
import jax.numpy as jnp
from jax.experimental import pallas as pl
from jax.experimental.pallas import tpu as pltpu


_TARGET_BLOCK_BYTES = 4 * 1024 * 1024          # ~4 MiB of input per grid step
_LANE_CANDIDATES = (8192, 4096, 2048, 1024, 512, 256, 128)


# ---------------------------------------------------------------------------
# Kernels
# ---------------------------------------------------------------------------
def _write_partials(out_ref, tp, fn, fp):
    """Write [TP, FN, FP] into lanes 0..2 of this tile's (1, 8, 128) output."""
    rr = jax.lax.broadcasted_iota(jnp.int32, (8, 128), 0)
    ll = jax.lax.broadcasted_iota(jnp.int32, (8, 128), 1)
    tile = jnp.where((rr == 0) & (ll == 0), tp,
           jnp.where((rr == 0) & (ll == 1), fn,
           jnp.where((rr == 0) & (ll == 2), fp, jnp.float32(0.0))))
    out_ref[0] = tile


def _tversky_onehot_kernel(logits_ref, targets_ref, out_ref, *,
                           n_rows, tile_rows, n_classes, pack, needs_mask):
    """Partial TP/FN/FP for one packed logits tile (class-index targets).

    logits_ref : (T, pack*C) native dtype (pack original rows per lane-row)
    targets_ref: (T, pack)   int32 class indices
    out_ref    : (1, 8, 128) f32 per-tile partials
    """
    x = logits_ref[...].astype(jnp.float32)          # upcast in-kernel (bf16 OK)
    tn, lane_w = x.shape
    p = 0.5 * jnp.tanh(0.5 * x) + 0.5                # sigmoid via 1 EUP op

    if needs_mask:
        i = pl.program_id(0)
        row_ids = jax.lax.broadcasted_iota(jnp.int32, (tn, 1), 0) + i * tile_rows
        valid = row_ids < n_rows
        p = jnp.where(valid, p, 0.0)                 # kills padded-row garbage/NaN
        valid_rows = jnp.minimum(
            jnp.int32(tile_rows), jnp.int32(n_rows) - i * tile_rows
        ).astype(jnp.float32)
    else:
        valid_rows = jnp.float32(tn)

    # One-hot is never materialized: mark the "hot" lane per packed group.
    lane_ids = jax.lax.broadcasted_iota(jnp.int32, (tn, lane_w), 1)
    tgt = targets_ref[...]                           # (T, pack) int32
    match = None
    for g in range(pack):                            # pack <= 8 (static)
        hot = tgt[:, g:g + 1] + g * n_classes        # (T, 1)
        m = lane_ids == hot
        match = m if match is None else (match | m)

    tp = jnp.sum(jnp.where(match, p, 0.0))
    fp = jnp.sum(p) - tp                             # == sum(p * (1 - onehot))
    fn = jnp.float32(pack) * valid_rows - tp         # sum(onehot) - tp
    _write_partials(out_ref, tp, fn, fp)


def _tversky_dense_kernel(inputs_ref, targets_ref, out_ref, *,
                          n_rows, tile_rows, needs_mask):
    """Partial TP/FN/FP when targets are dense (same flattened shape)."""
    x = inputs_ref[...].astype(jnp.float32)
    t = targets_ref[...].astype(jnp.float32)
    tn = x.shape[0]
    p = 0.5 * jnp.tanh(0.5 * x) + 0.5

    if needs_mask:
        i = pl.program_id(0)
        row_ids = jax.lax.broadcasted_iota(jnp.int32, (tn, 1), 0) + i * tile_rows
        valid = row_ids < n_rows
        p = jnp.where(valid, p, 0.0)
        t = jnp.where(valid, t, 0.0)

    tp = jnp.sum(p * t)
    fn = jnp.sum(t) - tp
    fp = jnp.sum(p) - tp
    _write_partials(out_ref, tp, fn, fp)


# ---------------------------------------------------------------------------
# Tiling helpers
# ---------------------------------------------------------------------------
def _vmem_budgets():
    """(double-buffered-input budget, vmem_limit_bytes), generation-aware."""
    try:
        cap = int(pltpu.get_tpu_info().vmem_capacity_bytes)
    except Exception:
        cap = 64 * 1024 * 1024                      # conservative (v7x-sized)
    if cap >= 96 * 1024 * 1024:                     # v5e / v6e: 128 MiB physical
        return 32 * 1024 * 1024, 80 * 1024 * 1024
    return 20 * 1024 * 1024, 48 * 1024 * 1024       # v7x: 64 MiB physical


def _pick_tile_rows(n_rows, row_bytes, target_bytes, budget_bytes):
    """Rows per tile: ~target_bytes of input per step, double-buffer <= budget."""
    by_budget = budget_bytes // max(1, 2 * row_bytes)
    t = min(target_bytes // max(1, row_bytes), by_budget)
    t = max(8, (int(t) // 8) * 8)
    return n_rows if t >= n_rows else t


def _sanitize_tile_rows(tile_rows, n_rows):
    tile_rows = int(tile_rows)
    if tile_rows >= n_rows or n_rows <= 8:
        return n_rows
    return max(8, (tile_rows // 8) * 8)


def _flatten_2d(x):
    """Free contiguous reshape to a lane-dense 2-D view (lane multiple of 128
    and capped at 8192 so tile bytes stay bounded on v7x's 64 MiB VMEM)."""
    total = int(x.size)
    for cand in _LANE_CANDIDATES:                   # prefer >= 8 rows
        if total % cand == 0 and total // cand >= 8:
            return x.reshape(total // cand, cand)
    for cand in _LANE_CANDIDATES:
        if total % cand == 0:
            return x.reshape(total // cand, cand)
    lane = 1                                        # rare: total not /128
    for cand in range(min(total, 512), 0, -1):
        if total % cand == 0:
            lane = cand
            break
    return x.reshape(total // lane, lane)


# ---------------------------------------------------------------------------
# pallas_call wrappers
# ---------------------------------------------------------------------------
def _tversky_partials_onehot(logits, targets, tile_rows=None):
    n, c = logits.shape
    # Lane-pack narrow C: k original rows per lane-row (free reshape).
    pack = 1
    if c < 128:
        pack = max(1, min(128 // c, 8))
        while pack > 1 and n % pack != 0:
            pack -= 1
    rows, lane = n // pack, c * pack
    logits_p = logits.reshape(rows, lane)
    targets_p = targets.reshape(rows, pack).astype(jnp.int32)

    itemsize = jnp.dtype(logits.dtype).itemsize
    budget, vmem_limit = _vmem_budgets()
    row_bytes = lane * itemsize + pack * 4
    if tile_rows is None:
        tile_rows = _pick_tile_rows(rows, row_bytes, _TARGET_BLOCK_BYTES, budget)
    else:
        tile_rows = _sanitize_tile_rows(tile_rows, rows)
    num_tiles = pl.cdiv(rows, tile_rows)
    needs_mask = (rows % tile_rows) != 0

    kernel = functools.partial(
        _tversky_onehot_kernel, n_rows=rows, tile_rows=tile_rows,
        n_classes=c, pack=pack, needs_mask=needs_mask)
    cost = pl.CostEstimate(
        flops=10 * n * c, transcendentals=n * c,
        bytes_accessed=n * c * itemsize + n * 4 + num_tiles * 8 * 128 * 4)

    partials = pl.pallas_call(
        kernel,
        out_shape=jax.ShapeDtypeStruct((num_tiles, 8, 128), jnp.float32),
        grid=(num_tiles,),
        in_specs=[
            pl.BlockSpec((tile_rows, lane), lambda i: (i, 0)),
            pl.BlockSpec((tile_rows, pack), lambda i: (i, 0)),
        ],
        out_specs=pl.BlockSpec((1, 8, 128), lambda i: (i, 0, 0)),
        compiler_params=pltpu.CompilerParams(
            dimension_semantics=("parallel",),
            vmem_limit_bytes=vmem_limit),
        cost_estimate=cost,
    )(logits_p, targets_p)

    totals = jnp.sum(partials, axis=(0, 1))
    return totals[0], totals[1], totals[2]


def _tversky_partials_dense(inputs_2d, targets_2d, tile_rows=None):
    rows, lane = inputs_2d.shape
    x_item = jnp.dtype(inputs_2d.dtype).itemsize
    t_item = jnp.dtype(targets_2d.dtype).itemsize
    budget, vmem_limit = _vmem_budgets()
    row_bytes = lane * (x_item + t_item)
    if tile_rows is None:
        tile_rows = _pick_tile_rows(rows, row_bytes, _TARGET_BLOCK_BYTES, budget)
    else:
        tile_rows = _sanitize_tile_rows(tile_rows, rows)
    num_tiles = pl.cdiv(rows, tile_rows)
    needs_mask = (rows % tile_rows) != 0

    kernel = functools.partial(
        _tversky_dense_kernel, n_rows=rows, tile_rows=tile_rows,
        needs_mask=needs_mask)
    cost = pl.CostEstimate(
        flops=8 * rows * lane, transcendentals=rows * lane,
        bytes_accessed=rows * lane * (x_item + t_item) + num_tiles * 8 * 128 * 4)

    partials = pl.pallas_call(
        kernel,
        out_shape=jax.ShapeDtypeStruct((num_tiles, 8, 128), jnp.float32),
        grid=(num_tiles,),
        in_specs=[
            pl.BlockSpec((tile_rows, lane), lambda i: (i, 0)),
            pl.BlockSpec((tile_rows, lane), lambda i: (i, 0)),
        ],
        out_specs=pl.BlockSpec((1, 8, 128), lambda i: (i, 0, 0)),
        compiler_params=pltpu.CompilerParams(
            dimension_semantics=("parallel",),
            vmem_limit_bytes=vmem_limit),
        cost_estimate=cost,
    )(inputs_2d, targets_2d)

    totals = jnp.sum(partials, axis=(0, 1))
    return totals[0], totals[1], totals[2]


def tversky_loss(inputs, targets, *, alpha, beta, smooth=1.0, tile_rows=None):
    """Device-side Tversky loss (scalar f32). Fully jittable, no host sync."""
    inputs = jnp.asarray(inputs)
    targets = jnp.asarray(targets)
    if inputs.size == 0:
        return jnp.float32(0.0)

    use_onehot = (targets.ndim == 1 and inputs.ndim == 2 and inputs.shape[1] > 1
                  and jnp.issubdtype(targets.dtype, jnp.integer))
    if use_onehot:
        tp, fn, fp = _tversky_partials_onehot(inputs, targets, tile_rows)
    else:
        if targets.dtype == jnp.bool_:
            targets = targets.astype(jnp.float32)
        tp, fn, fp = _tversky_partials_dense(
            _flatten_2d(inputs), _flatten_2d(targets), tile_rows)

    tversky = (tp + smooth) / (tp + alpha * fn + beta * fp + smooth)
    return (jnp.float32(1.0) - tversky).astype(jnp.float32)


class TverskyLossPallas:
    """Mirrors the PyTorch TverskyLoss module (alpha/beta weighting, smooth=1.0)."""

    def __init__(self, alpha: float, beta: float) -> None:
        self.alpha = float(alpha)
        self.beta = float(beta)
        self.smooth = 1.0

    def __call__(self, inputs, targets):
        return tversky_loss(inputs, targets, alpha=self.alpha, beta=self.beta,
                            smooth=self.smooth)


# ---------------------------------------------------------------------------
# Pure-JAX reference + self-test
# ---------------------------------------------------------------------------
def _reference(inputs, targets, alpha, beta, smooth=1.0):
    inputs = inputs.astype(jnp.float32)
    if targets.ndim == 1 and inputs.ndim == 2 and inputs.shape[1] > 1:
        targets = jax.nn.one_hot(targets, inputs.shape[1], dtype=jnp.float32)
    else:
        targets = targets.astype(jnp.float32)
    p = jax.nn.sigmoid(inputs)
    tp = jnp.sum(p * targets)
    fn = jnp.sum((1.0 - p) * targets)
    fp = jnp.sum(p * (1.0 - targets))
    return 1.0 - (tp + smooth) / (tp + alpha * fn + beta * fp + smooth)


if __name__ == "__main__":
    key = jax.random.PRNGKey(0)
    k1, k2, k3, k4, k5, k6 = jax.random.split(key, 6)

    alpha, beta = 0.7, 0.3
    loss_mod = TverskyLossPallas(alpha=alpha, beta=beta)

    # Case 1: class-index targets (N,) + logits (N, C); C=32 lane-packed 4x.
    N, C = 20, 32
    logits = jax.random.normal(k1, (N, C), dtype=jnp.float32)
    targets_idx = jax.random.randint(k2, (N,), 0, C, dtype=jnp.int32)
    out1 = jax.block_until_ready(loss_mod(logits, targets_idx))
    ref1 = jax.block_until_ready(_reference(logits, targets_idx, alpha, beta))
    assert abs(float(out1) - float(ref1)) < 1e-5, (float(out1), float(ref1))

    # Case 2: dense (segmentation-style) targets with the same shape as inputs.
    x = jax.random.normal(k3, (2, 4, 16, 16), dtype=jnp.float32)
    t = (jax.random.uniform(k4, (2, 4, 16, 16)) > 0.5).astype(jnp.float32)
    out2 = jax.block_until_ready(loss_mod(x, t))
    ref2 = jax.block_until_ready(_reference(x, t, alpha, beta))
    assert abs(float(out2) - float(ref2)) < 1e-5, (float(out2), float(ref2))

    # Case 3: bf16 logits, multi-tile parallel grid with a masked partial last
    # tile (200 rows -> 50 packed rows, tile_rows=8 -> 7 tiles, 50 % 8 != 0).
    N3, C3 = 200, 32
    logits3 = jax.random.normal(k5, (N3, C3)).astype(jnp.bfloat16)
    targets3 = jax.random.randint(k6, (N3,), 0, C3, dtype=jnp.int32)
    out3 = jax.block_until_ready(
        tversky_loss(logits3, targets3, alpha=alpha, beta=beta, tile_rows=8))
    ref3 = jax.block_until_ready(_reference(logits3, targets3, alpha, beta))
    assert abs(float(out3) - float(ref3)) < 1e-4, (float(out3), float(ref3))

    # Case 4: dense path, multi-tile with masked last tile (15 rows, tile 8).
    x4 = jax.random.normal(k1, (3, 5, 16, 16), dtype=jnp.float32)
    t4 = (jax.random.uniform(k2, (3, 5, 16, 16)) > 0.5).astype(jnp.float32)
    out4 = jax.block_until_ready(
        tversky_loss(x4, t4, alpha=alpha, beta=beta, tile_rows=8))
    ref4 = jax.block_until_ready(_reference(x4, t4, alpha, beta))
    assert abs(float(out4) - float(ref4)) < 1e-5, (float(out4), float(ref4))

    print("KERNEL_OK")
</pallas_src>

<mosaic_0001>
module attributes {stable_mosaic.version = 11 : i64} {
  func.func @_tversky_onehot_kernel(%arg0: i32, %arg1: memref<5x128xf32, #tpu.memory_space<vmem>>, %arg2: memref<5x4xi32, #tpu.memory_space<vmem>>, %arg3: memref<1x8x128xf32, #tpu.memory_space<vmem>>) attributes {dimension_semantics = [#tpu.dimension_semantics<parallel>], iteration_bounds = array<i64: 1>, scalar_prefetch = 0 : i64, scratch_operands = 0 : i64, tpu.core_type = #tpu.core_type<tc>, window_params = [{transform_indices = @transform_0, window_bounds = array<i64: 5, 128>}, {transform_indices = @transform_1, window_bounds = array<i64: 5, 4>}, {transform_indices = @transform_2, window_bounds = array<i64: 1, 8, 128>}]} {
    %c0 = arith.constant 0 : index
    %c0_0 = arith.constant 0 : index
    %0 = vector.load %arg1[%c0, %c0_0] : memref<5x128xf32, #tpu.memory_space<vmem>>, vector<5x128xf32>
    %cst = arith.constant 5.000000e-01 : f32
    %1 = vector.broadcast %cst : f32 to vector<5x128xf32>
    %2 = arith.mulf %1, %0 : vector<5x128xf32>
    %3 = math.tanh %2 : vector<5x128xf32>
    %cst_1 = arith.constant 5.000000e-01 : f32
    %4 = vector.broadcast %cst_1 : f32 to vector<5x128xf32>
    %5 = arith.mulf %4, %3 : vector<5x128xf32>
    %cst_2 = arith.constant 5.000000e-01 : f32
    %6 = vector.broadcast %cst_2 : f32 to vector<5x128xf32>
    %7 = arith.addf %5, %6 : vector<5x128xf32>
    %8 = tpu.iota {dimensions = array<i32: 1>} : vector<5x128xi32>
    %c0_3 = arith.constant 0 : index
    %c0_4 = arith.constant 0 : index
    %9 = vector.load %arg2[%c0_3, %c0_4] : memref<5x4xi32, #tpu.memory_space<vmem>>, vector<5x4xi32>
    %10 = vector.extract_strided_slice %9 {offsets = [0, 0], sizes = [5, 1], strides = [1, 1]} : vector<5x4xi32> to vector<5x1xi32>
    %c0_i32 = arith.constant 0 : i32
    %11 = vector.broadcast %c0_i32 : i32 to vector<5x1xi32>
    %12 = arith.addi %10, %11 : vector<5x1xi32>
    %13 = vector.broadcast %12 : vector<5x1xi32> to vector<5x128xi32>
    %14 = arith.cmpi eq, %8, %13 : vector<5x128xi32>
    %15 = vector.extract_strided_slice %9 {offsets = [0, 1], sizes = [5, 1], strides = [1, 1]} : vector<5x4xi32> to vector<5x1xi32>
    %c32_i32 = arith.constant 32 : i32
    %16 = vector.broadcast %c32_i32 : i32 to vector<5x1xi32>
    %17 = arith.addi %15, %16 : vector<5x1xi32>
    %18 = vector.broadcast %17 : vector<5x1xi32> to vector<5x128xi32>
    %19 = arith.cmpi eq, %8, %18 : vector<5x128xi32>
    %20 = arith.ori %14, %19 : vector<5x128xi1>
    %21 = vector.extract_strided_slice %9 {offsets = [0, 2], sizes = [5, 1], strides = [1, 1]} : vector<5x4xi32> to vector<5x1xi32>
    %c64_i32 = arith.constant 64 : i32
    %22 = vector.broadcast %c64_i32 : i32 to vector<5x1xi32>
    %23 = arith.addi %21, %22 : vector<5x1xi32>
    %24 = vector.broadcast %23 : vector<5x1xi32> to vector<5x128xi32>
    %25 = arith.cmpi eq, %8, %24 : vector<5x128xi32>
    %26 = arith.ori %20, %25 : vector<5x128xi1>
    %27 = vector.extract_strided_slice %9 {offsets = [0, 3], sizes = [5, 1], strides = [1, 1]} : vector<5x4xi32> to vector<5x1xi32>
    %c96_i32 = arith.constant 96 : i32
    %28 = vector.broadcast %c96_i32 : i32 to vector<5x1xi32>
    %29 = arith.addi %27, %28 : vector<5x1xi32>
    %30 = vector.broadcast %29 : vector<5x1xi32> to vector<5x128xi32>
    %31 = arith.cmpi eq, %8, %30 : vector<5x128xi32>
    %32 = arith.ori %26, %31 : vector<5x128xi1>
    %cst_5 = arith.constant 0.000000e+00 : f32
    %33 = vector.broadcast %cst_5 : f32 to vector<5x128xf32>
    %34 = arith.select %32, %7, %33 : vector<5x128xi1>, vector<5x128xf32>
    %35 = vector.shape_cast %34 : vector<5x128xf32> to vector<1x5x128xf32>
    %cst_6 = arith.constant dense<0.000000e+00> : vector<1xf32>
    %36 = vector.multi_reduction <add>, %35, %cst_6 [1, 2] : vector<1x5x128xf32> to vector<1xf32>
    %37 = vector.shape_cast %36 : vector<1xf32> to vector<1x1x1xf32>
    %38 = vector.extract %37[0, 0, 0] : f32 from vector<1x1x1xf32>
    %39 = vector.shape_cast %7 : vector<5x128xf32> to vector<1x5x128xf32>
    %cst_7 = arith.constant dense<0.000000e+00> : vector<1xf32>
    %40 = vector.multi_reduction <add>, %39, %cst_7 [1, 2] : vector<1x5x128xf32> to vector<1xf32>
    %41 = vector.shape_cast %40 : vector<1xf32> to vector<1x1x1xf32>
    %42 = vector.extract %41[0, 0, 0] : f32 from vector<1x1x1xf32>
    %43 = arith.subf %42, %38 : f32
    %cst_8 = arith.constant 4.000000e+00 : f32
    %cst_9 = arith.constant 5.000000e+00 : f32
    %44 = arith.mulf %cst_8, %cst_9 : f32
    %45 = arith.subf %44, %38 : f32
    %46 = tpu.iota {dimensions = array<i32: 0>} : vector<8x128xi32>
    %47 = tpu.iota {dimensions = array<i32: 1>} : vector<8x128xi32>
    %c0_i32_10 = arith.constant 0 : i32
    %48 = vector.broadcast %c0_i32_10 : i32 to vector<8x128xi32>
    %49 = arith.cmpi eq, %46, %48 : vector<8x128xi32>
    %c0_i32_11 = arith.constant 0 : i32
    %50 = vector.broadcast %c0_i32_11 : i32 to vector<8x128xi32>
    %51 = arith.cmpi eq, %47, %50 : vector<8x128xi32>
    %52 = arith.andi %49, %51 : vector<8x128xi1>
    %c0_i32_12 = arith.constant 0 : i32
    %53 = vector.broadcast %c0_i32_12 : i32 to vector<8x128xi32>
    %54 = arith.cmpi eq, %46, %53 : vector<8x128xi32>
    %c1_i32 = arith.constant 1 : i32
    %55 = vector.broadcast %c1_i32 : i32 to vector<8x128xi32>
    %56 = arith.cmpi eq, %47, %55 : vector<8x128xi32>
    %57 = arith.andi %54, %56 : vector<8x128xi1>
    %c0_i32_13 = arith.constant 0 : i32
    %58 = vector.broadcast %c0_i32_13 : i32 to vector<8x128xi32>
    %59 = arith.cmpi eq, %46, %58 : vector<8x128xi32>
    %c2_i32 = arith.constant 2 : i32
    %60 = vector.broadcast %c2_i32 : i32 to vector<8x128xi32>
    %61 = arith.cmpi eq, %47, %60 : vector<8x128xi32>
    %62 = arith.andi %59, %61 : vector<8x128xi1>
    %cst_14 = arith.constant 0.000000e+00 : f32
    %63 = vector.broadcast %43 : f32 to vector<8x128xf32>
    %64 = vector.broadcast %cst_14 : f32 to vector<8x128xf32>
    %65 = arith.select %62, %63, %64 : vector<8x128xi1>, vector<8x128xf32>
    %66 = vector.broadcast %45 : f32 to vector<8x128xf32>
    %67 = arith.select %57, %66, %65 : vector<8x128xi1>, vector<8x128xf32>
    %68 = vector.broadcast %38 : f32 to vector<8x128xf32>
    %69 = arith.select %52, %68, %67 : vector<8x128xi1>, vector<8x128xf32>
    %c0_15 = arith.constant 0 : index
    %c0_16 = arith.constant 0 : index
    %c0_17 = arith.constant 0 : index
    %70 = vector.load %arg3[%c0_15, %c0_16, %c0_17] : memref<1x8x128xf32, #tpu.memory_space<vmem>>, vector<1x8x128xf32>
    %71 = vector.shape_cast %70 : vector<1x8x128xf32> to vector<8x128xf32>
    %72 = vector.shape_cast %69 : vector<8x128xf32> to vector<1x8x128xf32>
    tpu.vector_store %arg3[%c0_15, %c0_16, %c0_17], %72 {strides = array<i32>} : memref<1x8x128xf32, #tpu.memory_space<vmem>>, vector<1x8x128xf32>,
    return
  }
  func.func @transform_0(%arg0: i32) -> (i32, i32) {
    %c0_i32 = arith.constant 0 : i32
    %c0_i32_0 = arith.constant 0 : i32
    return %arg0, %c0_i32 : i32, i32
  }
  func.func @transform_1(%arg0: i32) -> (i32, i32) {
    %c0_i32 = arith.constant 0 : i32
    %c0_i32_0 = arith.constant 0 : i32
    return %arg0, %c0_i32 : i32, i32
  }
  func.func @transform_2(%arg0: i32) -> (i32, i32, i32) {
    %c0_i32 = arith.constant 0 : i32
    %c0_i32_0 = arith.constant 0 : i32
    %c0_i32_1 = arith.constant 0 : i32
    return %arg0, %c0_i32, %c0_i32_0 : i32, i32, i32
  }
}

</mosaic_0001>

<llo_original>
// kernel: tpu_custom_call.1
$region0: #{tpu_custom_call.1}
  #allocation0 [shape = 'u32[]', space=smem, size = 0x4, offset = 0x4, fixed_abs, tag = 'smem constant byte address 0x4 - core index']
  #allocation1 [shape = 'u32[144,128]{1,0:T(1,128)}', space=vmem, size = 0x12000, scoped, tag = 'internal scratch']
  %s0 = inlined_call_operand.vmem [shape: f32[5,128], index: 0, kind: input, shape index: {}]
  %s1 = inlined_call_operand.vmem [shape: s32[5,4], index: 1, kind: input, shape index: {}]
  %s2 = inlined_call_operand.hbm [shape: f32[1,8,128], index: 2, kind: output, shape index: {}]
  %s3 = sld [smem:[#allocation0]]
  $region18: #{tpu_custom_call.1} parent=0
    _
  %s5 = ssub.s32 1, %s3
  %s6 = scalar_select 0, %s5, %s3
  $region1: #{tpu_custom_call.1} parent=0
    #allocation2 [shape = 'u8[4096]{0}', space=vmem, size = 0x1000, scoped, tag = 'output window, operand 0, single buffered']
    #allocation3 [shape = 's32[1]{0}', space=sflag, size = 0x4, scoped, tag = 'scoped memory for tpu_custom_call.1']
    %7 = vsyncpa [#allocation3], 0
    // Predicated region
    $region2: #{tpu_custom_call.1} parent=1 // pred_check
      _
    $region3: #{tpu_custom_call.1} parent=1 // pred_check_branch
      %9 = sbr.rel (0) target = $region5
    $region4: #{tpu_custom_call.1} parent=1 // pred_region
      _
    $region5: #{tpu_custom_call.1} parent=1 // pred_fallthru
      _
    // Predicated region
    $region6: #{tpu_custom_call.1} parent=1 // pred_check
      _
    $region7: #{tpu_custom_call.1} parent=1 // pred_check_branch
      %11 = sbr.rel (0) target = $region9
    $region8: #{tpu_custom_call.1} parent=1 // pred_region
      _
    $region9: #{tpu_custom_call.1} parent=1 // pred_fallthru
      _
    %v12 = vld [vmem:[%s0] sm:$0x1f]
    %v13 = vmul.f32 %v12, 0.5
    %v14 = vtanh.pop %v13
    %v15 = vmul.f32 %v14, 0.5
    %v16 = vadd.f32 %v15, 0.5
    %v17 = vlaneseq
    %v18 = vand.u32 %v17, 127
    %v19 = vld [vmem:[%s1] sm:$0x1f]
    %20 = vset.pattern.permute.xlu0 0
    %21 = vperm.xlu0 %20, %v19
    %v22 = vpop.permute.xlu0 %21
    %vm23 = vcmp.eq.s32.totalorder %v18, %v22
    %v24 = vadd.s32 %v19, 32
    %25 = vset.pattern.permute.xlu0 1
    %26 = vperm.xlu0 %25, %v24
    %v27 = vpop.permute.xlu0 %26
    %vm28 = vcmp.eq.s32.totalorder %v18, %v27
    %vm29 = vmor %vm23, %vm28
    %v30 = vadd.s32 %v19, 64
    %31 = vset.pattern.permute.xlu0 2
    %32 = vperm.xlu0 %31, %v30
    %v33 = vpop.permute.xlu0 %32
    %vm34 = vcmp.eq.s32.totalorder %v18, %v33
    %vm35 = vmor %vm29, %vm34
    %v36 = vadd.s32 %v19, 96
    %37 = vset.pattern.permute.xlu0 3
    %38 = vperm.xlu0 %37, %v36
    %v39 = vpop.permute.xlu0 %38
    %vm40 = vcmp.eq.s32.totalorder %v18, %v39
    %vm41 = vmor %vm35, %vm40
    %v42 = vsel %vm41, %v16, 0.0
    %vm43 = vcmask 1044480
    %v44 = vsel %vm43, %v42, 0.0
    %45 = vadd.xlane.f32.xlu0 %v44
    %v46 = vpop.xlane.xlu0 %45
    %v47 = vrot.slane %v46, 4
    %v48 = vadd.f32 %v46, %v47
    %v49 = vrot.slane %v48, 2
    %v50 = vadd.f32 %v48, %v49
    %v51 = vrot.slane %v50, 1
    %v52 = vadd.f32 %v50, %v51
    %s53 = vtos %v52
    %v54 = vsel %vm43, %v16, 0.0
    %55 = vadd.xlane.f32.xlu0 %v54
    %v56 = vpop.xlane.xlu0 %55
    %v57 = vrot.slane %v56, 4
    %v58 = vadd.f32 %v56, %v57
    %v59 = vrot.slane %v58, 2
    %v60 = vadd.f32 %v58, %v59
    %v61 = vrot.slane %v60, 1
    %v62 = vadd.f32 %v60, %v61
    %s63 = vtos %v62
    %s64 = ssub.f32 %s63, %s53
    %s65 = ssub.f32 20.0, %s53
    %v66 = vlaneseq
    %v67 = vshrl.u32 %v66, 7
    %vm68 = vcmp.eq.s32.totalorder %v67, 0
    %vm69 = vcmp.eq.s32.totalorder %v18, 0
    %vm70 = vmand %vm68, %vm69
    %vm71 = vcmp.eq.s32.totalorder %v18, 1
    %vm72 = vmand %vm68, %vm71
    %vm73 = vcmp.eq.s32.totalorder %v18, 2
    %vm74 = vmand %vm68, %vm73
    %v75 = vstv %s64
    %v76 = vsel %vm74, %v75, 0.0
    %v77 = vstv %s65
    %v78 = vsel %vm72, %v77, %v76
    %v79 = vstv %s53
    %v80 = vsel %vm70, %v79, %v78
    %81 = vst [vmem:[#allocation2] sm:$0xff] %v80
    // Predicated region
    $region10: #{tpu_custom_call.1} parent=1 // pred_check
      _
    $region11: #{tpu_custom_call.1} parent=1 // pred_check_branch
      %83 = sbr.rel (0) target = $region13
    $region12: #{tpu_custom_call.1} parent=1 // pred_region
      %s85 = ssub.s32 128, 128
      %86 = vsyncadd [#allocation3], %s85
      %s88 = sshll.u32 [#allocation2], 4
      %s89 = int_to_ptr.vmem [resolvable:$true] %s88
      %91 = dma.vmem_to_hbm [thread:$0]  %s89, 128, %s2, [#allocation3]
    $region13: #{tpu_custom_call.1} parent=1 // pred_fallthru
      _
    // Predicated region
    $region14: #{tpu_custom_call.1} parent=1 // pred_check
      _
    $region15: #{tpu_custom_call.1} parent=1 // pred_check_branch
      %93 = sbr.rel (0) target = $region17
    $region16: #{tpu_custom_call.1} parent=1 // pred_region
      %94 = dma.done [#allocation3], 128
    $region17: #{tpu_custom_call.1} parent=1 // pred_fallthru
      _
    %95 = vsyncpa [#allocation3], 1

</llo_original>
